<compile_context>
chip_gen: v7x
topology: tpu7x:2x2x1
jax: 0.10.0
libtpu: 0.0.40
codegen_flags: <defaults>
</compile_context>

<pallas_src>
import jax
import jax.numpy as jnp
from jax.experimental import pallas as pl
from jax.experimental.pallas import tpu as pltpu


def _round_up(x, m):
    return ((x + m - 1) // m) * m


def _linear_kernel_single_k(x_ref, w_ref, b_ref, o_ref):
    """out = x @ w + b, whole reduction in one grid step (no scratch needed)."""
    acc = jnp.dot(x_ref[...], w_ref[...], preferred_element_type=jnp.float32)
    o_ref[...] = (acc + b_ref[...]).astype(o_ref.dtype)


def _linear_kernel_multi_k(x_ref, w_ref, b_ref, o_ref, acc_ref):
    """out[i, j] = sum_k x[i, k] @ w[k, j] + b[j], accumulated in f32 VMEM."""
    k = pl.program_id(2)

    @pl.when(k == 0)
    def _():
        acc_ref[...] = jnp.zeros_like(acc_ref)

    acc_ref[...] += jnp.dot(
        x_ref[...], w_ref[...], preferred_element_type=jnp.float32
    )

    @pl.when(k == pl.num_programs(2) - 1)
    def _():
        # bias add in f32, single lane-dense store of the (tm, tn) tile.
        o_ref[...] = (acc_ref[...] + b_ref[...]).astype(o_ref.dtype)


def classifier_forward(x, weight, bias, *, force_pallas=False):
    """classifier type='A': single nn.Linear(latent_dim, num_classes).

    x:      (B, latent_dim)           float32
    weight: (latent_dim, num_classes) (transposed torch layout)
    bias:   (num_classes,)
    returns (B, num_classes)
    """
    B, D = x.shape
    D2, C = weight.shape
    assert D == D2
    assert bias.shape == (C,)

    # Tiny-shape dispatch: a pallas_call costs ~0.35 us per grid step plus DMA
    # issue latency, which dwarfs 2*B*D*C flops for small heads -> let XLA fuse it.
    if not force_pallas and (B * D * C) < (128 * 128 * 128):
        return x @ weight + bias

    # --- Tile / padding choices -------------------------------------------------
    # N: lane-dense, tn = 128 (works on every MXU geometry, 1 unmasked vst path).
    tn = 128
    Cp = _round_up(C, tn)

    # M: f32 sublane multiple of 8; cap tile at 256 rows.
    if B <= 256:
        tm = _round_up(B, 8)
        Bp = tm
    else:
        tm = 256
        Bp = _round_up(B, tm)

    # K: single step if the whole reduction fits a reasonable tile, else tk=512.
    if D <= 512:
        tk = D          # block dim == full array dim -> legal even if not %128
        Dp = D
    else:
        tk = 512
        Dp = _round_up(D, tk)

    # Zero-padding is numerically exact: padded K rows contribute 0 to the dot,
    # padded M/N rows/cols are sliced off below.
    xp = x if (Bp == B and Dp == D) else jnp.pad(x, ((0, Bp - B), (0, Dp - D)))
    wp = weight if (Dp == D and Cp == C) else jnp.pad(weight, ((0, Dp - D), (0, Cp - C)))
    bp = jnp.pad(bias, (0, Cp - C)).reshape(1, Cp)

    k_steps = Dp // tk
    grid = (Bp // tm, Cp // tn, k_steps)

    cost = pl.CostEstimate(
        flops=2 * B * D * C,
        transcendentals=0,
        bytes_accessed=(B * D + D * C + B * C + C) * x.dtype.itemsize,
    )

    in_specs = [
        pl.BlockSpec((tm, tk), lambda i, j, k: (i, k)),
        pl.BlockSpec((tk, tn), lambda i, j, k: (k, j)),
        pl.BlockSpec((1, tn), lambda i, j, k: (0, j)),
    ]
    out_spec = pl.BlockSpec((tm, tn), lambda i, j, k: (i, j))

    if k_steps == 1:
        kernel = _linear_kernel_single_k
        scratch_shapes = []
    else:
        kernel = _linear_kernel_multi_k
        scratch_shapes = [pltpu.VMEM((tm, tn), jnp.float32)]

    out_p = pl.pallas_call(
        kernel,
        out_shape=jax.ShapeDtypeStruct((Bp, Cp), x.dtype),
        grid=grid,
        in_specs=in_specs,
        out_specs=out_spec,
        scratch_shapes=scratch_shapes,
        compiler_params=pltpu.CompilerParams(
            dimension_semantics=("parallel", "parallel", "arbitrary"),
        ),
        cost_estimate=cost,
    )(xp, wp, bp)

    if Bp == B and Cp == C:
        return out_p
    return out_p[:B, :C]


if __name__ == "__main__":
    # Small shapes consistent with the module defaults.
    latent_dim = 32
    num_classes = 10
    batch = 8

    key = jax.random.PRNGKey(0)
    kx, kw, kb = jax.random.split(key, 3)

    # Deterministic synthetic parameters (nn.Linear shapes: W (C, D), b (C,)),
    # stored transposed as (D, C) for the kernel.
    x = jax.random.normal(kx, (batch, latent_dim), dtype=jnp.float32)
    w_t = jax.random.normal(kw, (latent_dim, num_classes), dtype=jnp.float32) * 0.1
    b = jax.random.normal(kb, (num_classes,), dtype=jnp.float32) * 0.1

    # force_pallas=True to exercise the Pallas path at this tiny demo size
    # (the default dispatch would hand it to plain XLA).
    out = classifier_forward(x, w_t, b, force_pallas=True)
    jax.block_until_ready(out)

    ref = x @ w_t + b
    assert out.shape == (batch, num_classes)
    assert jnp.allclose(out, ref, atol=1e-5, rtol=1e-5)

    # Also exercise the multi-K accumulator path at a modest size.
    k2x, k2w, k2b = jax.random.split(jax.random.PRNGKey(1), 3)
    B2, D2_, C2 = 200, 1024, 300
    x2 = jax.random.normal(k2x, (B2, D2_), dtype=jnp.float32)
    w2 = jax.random.normal(k2w, (D2_, C2), dtype=jnp.float32) * 0.05
    b2 = jax.random.normal(k2b, (C2,), dtype=jnp.float32) * 0.05
    out2 = classifier_forward(x2, w2, b2, force_pallas=True)
    jax.block_until_ready(out2)
    ref2 = x2 @ w2 + b2
    assert out2.shape == (B2, C2)
    assert jnp.allclose(out2, ref2, atol=1e-4, rtol=1e-4)

    print("KERNEL_OK")
</pallas_src>

<mosaic_0001>
module attributes {stable_mosaic.version = 11 : i64} {
  func.func @_linear_kernel_single_k(%arg0: i32, %arg1: i32, %arg2: i32, %arg3: memref<8x32xf32, #tpu.memory_space<vmem>>, %arg4: memref<32x128xf32, #tpu.memory_space<vmem>>, %arg5: memref<1x128xf32, #tpu.memory_space<vmem>>, %arg6: memref<8x128xf32, #tpu.memory_space<vmem>>) attributes {dimension_semantics = [#tpu.dimension_semantics<parallel>, #tpu.dimension_semantics<parallel>, #tpu.dimension_semantics<arbitrary>], iteration_bounds = array<i64: 1, 1, 1>, scalar_prefetch = 0 : i64, scratch_operands = 0 : i64, tpu.core_type = #tpu.core_type<tc>, window_params = [{transform_indices = @transform_0, window_bounds = array<i64: 8, 32>}, {transform_indices = @transform_1, window_bounds = array<i64: 32, 128>}, {transform_indices = @transform_2, window_bounds = array<i64: 1, 128>}, {transform_indices = @transform_3, window_bounds = array<i64: 8, 128>}]} {
    %c0 = arith.constant 0 : index
    %c0_0 = arith.constant 0 : index
    %0 = vector.load %arg3[%c0, %c0_0] : memref<8x32xf32, #tpu.memory_space<vmem>>, vector<8x32xf32>
    %c0_1 = arith.constant 0 : index
    %c0_2 = arith.constant 0 : index
    %1 = vector.load %arg4[%c0_1, %c0_2] : memref<32x128xf32, #tpu.memory_space<vmem>>, vector<32x128xf32>
    %cst = arith.constant dense<0.000000e+00> : vector<8x128xf32>
    %2 = tpu.matmul %0, %1, %cst {dimension_numbers = #tpu.dot_dimension_numbers<[1], [0], [0], [1], [0, 0, 1, 1], [], []>} : vector<8x32xf32>, vector<32x128xf32>, vector<8x128xf32> -> vector<8x128xf32>
    %c0_3 = arith.constant 0 : index
    %c0_4 = arith.constant 0 : index
    %3 = vector.load %arg5[%c0_3, %c0_4] : memref<1x128xf32, #tpu.memory_space<vmem>>, vector<1x128xf32>
    %4 = vector.broadcast %3 : vector<1x128xf32> to vector<8x128xf32>
    %5 = arith.addf %2, %4 : vector<8x128xf32>
    %c0_5 = arith.constant 0 : index
    %c0_6 = arith.constant 0 : index
    %6 = vector.load %arg6[%c0_5, %c0_6] : memref<8x128xf32, #tpu.memory_space<vmem>>, vector<8x128xf32>
    tpu.vector_store %arg6[%c0_5, %c0_6], %5 {strides = array<i32>} : memref<8x128xf32, #tpu.memory_space<vmem>>, vector<8x128xf32>,
    return
  }
  func.func @transform_0(%arg0: i32, %arg1: i32, %arg2: i32) -> (i32, i32) {
    %c0_i32 = arith.constant 0 : i32
    return %arg0, %arg2 : i32, i32
  }
  func.func @transform_1(%arg0: i32, %arg1: i32, %arg2: i32) -> (i32, i32) {
    %c0_i32 = arith.constant 0 : i32
    return %arg2, %arg1 : i32, i32
  }
  func.func @transform_2(%arg0: i32, %arg1: i32, %arg2: i32) -> (i32, i32) {
    %c0_i32 = arith.constant 0 : i32
    %c0_i32_0 = arith.constant 0 : i32
    return %c0_i32, %arg1 : i32, i32
  }
  func.func @transform_3(%arg0: i32, %arg1: i32, %arg2: i32) -> (i32, i32) {
    %c0_i32 = arith.constant 0 : i32
    return %arg0, %arg1 : i32, i32
  }
}

</mosaic_0001>

<llo_original>
// kernel: tpu_custom_call.1
$region0: #{tpu_custom_call.1}
  #allocation0 [shape = 'u32[]', space=smem, size = 0x4, offset = 0x4, fixed_abs, tag = 'smem constant byte address 0x4 - core index']
  #allocation1 [shape = 'u32[144,128]{1,0:T(1,128)}', space=vmem, size = 0x12000, scoped, tag = 'internal scratch']
  %s0 = inlined_call_operand.hbm [shape: f32[8,32], index: 0, kind: input, shape index: {}]
  %s1 = inlined_call_operand.hbm [shape: f32[32,128], index: 1, kind: input, shape index: {}]
  %s2 = inlined_call_operand.vmem [shape: f32[1,128], index: 2, kind: input, shape index: {}]
  %s3 = inlined_call_operand.hbm [shape: f32[8,128], index: 3, kind: output, shape index: {}]
  %s4 = sld [smem:[#allocation0]]
  $region30: #{tpu_custom_call.1} parent=0
    _
  %s6 = ssub.s32 1, %s4
  %s7 = scalar_select 0, %s6, %s4
  $region1: #{tpu_custom_call.1} parent=0
    #allocation2 [shape = 'u8[4096]{0}', space=vmem, size = 0x1000, scoped, tag = 'input window, operand 0, single buffered']
    #allocation3 [shape = 's32[1]{0}', space=sflag, size = 0x4, scoped, tag = 'scoped memory for tpu_custom_call.1']
    #allocation4 [shape = 's32[1]{0}', space=sflag, size = 0x4, scoped, tag = 'scoped memory for tpu_custom_call.1']
    #allocation5 [shape = 'u8[16384]{0}', space=vmem, size = 0x4000, scoped, tag = 'input window, operand 1, single buffered']
    #allocation6 [shape = 's32[1]{0}', space=sflag, size = 0x4, scoped, tag = 'scoped memory for tpu_custom_call.1']
    #allocation7 [shape = 'u8[4096]{0}', space=vmem, size = 0x1000, scoped, tag = 'output window, operand 0, single buffered']
    %8 = vsyncpa [#allocation3], 0
    %9 = vsyncpa [#allocation6], 0
    %10 = vsyncpa [#allocation4], 0
    // Predicated region
    $region2: #{tpu_custom_call.1} parent=1 // pred_check
      _
    $region3: #{tpu_custom_call.1} parent=1 // pred_check_branch
      %12 = sbr.rel (0) target = $region5
    $region4: #{tpu_custom_call.1} parent=1 // pred_region
      %s14 = ssub.s32 128, 128
      %15 = vsyncadd [#allocation3], %s14
      %s17 = sshll.u32 [#allocation2], 4
      %s18 = int_to_ptr.vmem [resolvable:$true] %s17
      %20 = dma.hbm_to_vmem [thread:$0]  %s0, 128, %s18, [#allocation3]
    $region5: #{tpu_custom_call.1} parent=1 // pred_fallthru
      _
    // Predicated region
    $region6: #{tpu_custom_call.1} parent=1 // pred_check
      _
    $region7: #{tpu_custom_call.1} parent=1 // pred_check_branch
      %22 = sbr.rel (0) target = $region9
    $region8: #{tpu_custom_call.1} parent=1 // pred_region
      %s24 = ssub.s32 512, 512
      %25 = vsyncadd [#allocation6], %s24
      %s26 = sshll.u32 [#allocation5], 4
      %s27 = int_to_ptr.vmem [resolvable:$true] %s26
      %32 = dma.hbm_to_vmem [thread:$0]  %s1, 512, %s27, [#allocation6], 128, 128, 8
    $region9: #{tpu_custom_call.1} parent=1 // pred_fallthru
      _
    // Predicated region
    $region10: #{tpu_custom_call.1} parent=1 // pred_check
      _
    $region11: #{tpu_custom_call.1} parent=1 // pred_check_branch
      %34 = sbr.rel (0) target = $region13
    $region12: #{tpu_custom_call.1} parent=1 // pred_region
      _
    $region13: #{tpu_custom_call.1} parent=1 // pred_fallthru
      _
    // Predicated region
    $region14: #{tpu_custom_call.1} parent=1 // pred_check
      _
    $region15: #{tpu_custom_call.1} parent=1 // pred_check_branch
      %36 = sbr.rel (0) target = $region17
    $region16: #{tpu_custom_call.1} parent=1 // pred_region
      %37 = dma.done [#allocation3], 128
    $region17: #{tpu_custom_call.1} parent=1 // pred_fallthru
      _
    // Predicated region
    $region18: #{tpu_custom_call.1} parent=1 // pred_check
      _
    $region19: #{tpu_custom_call.1} parent=1 // pred_check_branch
      %39 = sbr.rel (0) target = $region21
    $region20: #{tpu_custom_call.1} parent=1 // pred_region
      %40 = dma.done [#allocation6], 512
    $region21: #{tpu_custom_call.1} parent=1 // pred_fallthru
      _
    %v41 = vld [vmem:[#allocation2] sm:$0xff]
    %v42 = vld [vmem:[#allocation5] sm:$0xff]
    %v43 = vld [vmem:[#allocation5 + $0x8] sm:$0xff]
    %v44 = vld [vmem:[#allocation5 + $0x10] sm:$0xff]
    %v45 = vld [vmem:[#allocation5 + $0x18] sm:$0xff]
    %v46 = vld [vmem:[%s2] sm:$0x1]
    %v48 = vlaneseq
    %v49 = vshrl.u32 %v48, 7
    %v50 = vsub.s32 0, %v49
    %v51 = vrot.slane %v46, %v50
    %vm53 = vcmask 261120
    %v55 = vsel %vm53, %v41, 0
    %57 = vmatprep.subr.mxu0 0.0
    %58 = vmatpush1.msra.mxu0 %v42
    %59 = vmatprep.subr.mxu0 0.0
    %60 = vmatpush1.msra.mxu0 %v43
    %61 = vmatprep.subr.mxu0 0.0
    %62 = vmatpush1.msra.mxu0 %v44
    %63 = vmatprep.subr.mxu0 0.0
    %64 = vmatpush1.msra.mxu0 %v45
    %65 = vmatprep.subr.mxu0 0.0
    %66 = vmatpush1.msra.mxu0 0.0
    %67 = vmatprep.subr.mxu0 0.0
    %68 = vmatpush1.msra.mxu0 0.0
    %69 = vmatprep.subr.mxu0 0.0
    %70 = vmatpush1.msra.mxu0 0.0
    %71 = vmatprep.subr.mxu0 0.0
    %72 = vmatpush1.msra.mxu0 0.0
    %73 = vmatprep.subr.mxu0 0.0
    %74 = vmatpush1.msra.mxu0 0.0
    %75 = vmatprep.subr.mxu0 0.0
    %76 = vmatpush1.msra.mxu0 0.0
    %77 = vmatprep.subr.mxu0 0.0
    %78 = vmatpush1.msra.mxu0 0.0
    %79 = vmatprep.subr.mxu0 0.0
    %80 = vmatpush1.msra.mxu0 0.0
    %81 = vmatprep.subr.mxu0 0.0
    %82 = vmatpush1.msra.mxu0 0.0
    %83 = vmatprep.subr.mxu0 0.0
    %84 = vmatpush1.msra.mxu0 0.0
    %85 = vmatprep.subr.mxu0 0.0
    %86 = vmatpush1.msra.mxu0 0.0
    %87 = vmatprep.subr.mxu0 0.0
    %88 = vmatpush1.msra.mxu0 0.0
    %89 = vmatprep.subr.mxu0 0.0
    %90 = vmatpush1.msra.mxu0 0.0
    %91 = vmatprep.subr.mxu0 0.0
    %92 = vmatpush1.msra.mxu0 0.0
    %93 = vmatprep.subr.mxu0 0.0
    %94 = vmatpush1.msra.mxu0 0.0
    %95 = vmatprep.subr.mxu0 0.0
    %96 = vmatpush1.msra.mxu0 0.0
    %97 = vmatprep.subr.mxu0 0.0
    %98 = vmatpush1.msra.mxu0 0.0
    %99 = vmatprep.subr.mxu0 0.0
    %100 = vmatpush1.msra.mxu0 0.0
    %101 = vmatprep.subr.mxu0 0.0
    %102 = vmatpush1.msra.mxu0 0.0
    %103 = vmatprep.subr.mxu0 0.0
    %104 = vmatpush1.msra.mxu0 0.0
    %105 = vmatprep.subr.mxu0 0.0
    %106 = vmatpush1.msra.mxu0 0.0
    %107 = vmatprep.subr.mxu0 0.0
    %108 = vmatpush1.msra.mxu0 0.0
    %109 = vmatprep.subr.mxu0 0.0
    %110 = vmatpush1.msra.mxu0 0.0
    %111 = vmatprep.subr.mxu0 0.0
    %112 = vmatpush1.msra.mxu0 0.0
    %113 = vmatprep.subr.mxu0 0.0
    %114 = vmatpush1.msra.mxu0 0.0
    %115 = vmatprep.subr.mxu0 0.0
    %116 = vmatpush1.msra.mxu0 0.0
    %117 = vmatprep.subr.mxu0 0.0
    %118 = vmatpush1.msra.mxu0 0.0
    %119 = vmatprep.subr.mxu0 0.0
    %120 = vmatpush1.msra.mxu0 0.0
    %121 = vmatprep.mubr.f32.mxu0 0.0
    %122 = vmatmul.mubr.f32.gmra.mrb[0].mxu0 %v55
    %v123 = vpop.f32.mrb[0].mxu0
    %v124 = vadd.f32 %v51, %v123
    %v125 = vpop.f32.mrb[0].mxu0
    %126 = vdwg.mxu0
    %127 = vst [vmem:[#allocation7] sm:$0xff] %v124
    // Predicated region
    $region22: #{tpu_custom_call.1} parent=1 // pred_check
      _
    $region23: #{tpu_custom_call.1} parent=1 // pred_check_branch
      %129 = sbr.rel (0) target = $region25
    $region24: #{tpu_custom_call.1} parent=1 // pred_region
      %s131 = ssub.s32 128, 128
      %132 = vsyncadd [#allocation4], %s131
      %s134 = sshll.u32 [#allocation7], 4
      %s135 = int_to_ptr.vmem [resolvable:$true] %s134
      %137 = dma.vmem_to_hbm [thread:$0]  %s135, 128, %s3, [#allocation4]
    $region25: #{tpu_custom_call.1} parent=1 // pred_fallthru
      _
    // Predicated region
    $region26: #{tpu_custom_call.1} parent=1 // pred_check
      _
    $region27: #{tpu_custom_call.1} parent=1 // pred_check_branch
      %139 = sbr.rel (0) target = $region29
    $region28: #{tpu_custom_call.1} parent=1 // pred_region
      %140 = dma.done [#allocation4], 128
    $region29: #{tpu_custom_call.1} parent=1 // pred_fallthru
      _
    %141 = vsyncpa [#allocation3], 1
    %142 = vsyncpa [#allocation6], 1
    %143 = vsyncpa [#allocation4], 1

</llo_original>
